<compile_context>
chip_gen: v5e
topology: v5e:2x2
jax: 0.10.0
libtpu: 0.0.40
codegen_flags: <defaults>
</compile_context>

<pallas_src>
import functools

import jax
import jax.numpy as jnp
from jax.experimental import pallas as pl
from jax.experimental.pallas import tpu as pltpu


def _round_up(a, b):
    return ((a + b - 1) // b) * b


def _vmem_capacity_bytes():
    """Physical VMEM per TensorCore; conservative fallback if the query fails."""
    try:
        info = pltpu.get_tpu_info()
        for attr in ("vmem_capacity_bytes", "vmem_size_bytes", "vmem_bytes"):
            v = getattr(info, attr, None)
            if v:
                return int(v)
    except Exception:
        pass
    return 64 * 1024 * 1024  # v7x-sized fallback; safe on every generation


# ---------------------------------------------------------------------------
# Kernel
# ---------------------------------------------------------------------------
def _mlp_kernel(n_layers, x_ref, *refs):
    """Fused [Linear -> ReLU] * n_hidden -> Linear on one batch tile.

    refs = (w_ref_0, ..., w_ref_{n_layers-1}, o_ref).  Every w_ref is a full
    (in, out) bf16 weight, VMEM-resident across all grid steps (constant block
    index).  Matmuls use bf16 operands with f32 MXU accumulation; the
    f32->bf16 input cast happens in-kernel so the wrapper never makes a
    separate pass over x.
    """
    w_refs = refs[:n_layers]
    o_ref = refs[n_layers]

    h = x_ref[...].astype(jnp.bfloat16)                  # in-kernel cast (VPU)
    for i, w_ref in enumerate(w_refs):
        h = jnp.dot(h, w_ref[...], preferred_element_type=jnp.float32)
        if i < n_layers - 1:                             # ReLU after all but last
            h = jnp.maximum(h, 0.0).astype(jnp.bfloat16)
    o_ref[...] = h.astype(o_ref.dtype)                   # f32 store


# ---------------------------------------------------------------------------
# Wrapper
# ---------------------------------------------------------------------------
def mlp_forward(x, weights, *, tile_m=None, vmem_limit_bytes=None):
    """_MLP.forward(x): x @ W0 -> ReLU -> ... -> @ W_last (no biases).

    x:       [N, n_input_dims] array (any float dtype).
    weights: list of (in_dim, out_dim) arrays (transposed vs PyTorch's
             (out, in) Linear layout), one per layer, no bias.
    Returns: [N, n_output_dims] float32.
    """
    n, d_in = x.shape
    n_layers = len(weights)
    d_out = weights[-1].shape[1]

    if not jnp.issubdtype(x.dtype, jnp.floating):
        x = x.astype(jnp.float32)          # mirrors the module's x.to(float32)

    # Tiny weights: one-time bf16 cast (MXU-native); callers running this
    # under jit in a loop should hoist/cache these casts themselves.
    w_bf = [w.astype(jnp.bfloat16) for w in weights]

    # ---- generation-gated tile / VMEM budget ------------------------------
    vmem_cap = _vmem_capacity_bytes()
    big_vmem = vmem_cap >= 100 * 1024 * 1024           # v5e / v6e (128 MiB/TC)
    if vmem_limit_bytes is None:
        vmem_limit_bytes = (96 if big_vmem else 44) * 1024 * 1024
    if tile_m is None:
        tile_m = 16384 if big_vmem else 8192           # v7x has only 64 MiB VMEM

    # One tile if the batch fits, else tile_m-row tiles (multiple of 8
    # sublanes).  The last block may be partial; Pallas masks its writeback.
    tile = min(tile_m, _round_up(max(n, 1), 8))
    tile = max(8, (tile // 8) * 8)
    grid_m = pl.cdiv(n, tile)
    if (not big_vmem) and grid_m > 1 and grid_m % 2 == 1:
        # v7x megacore: prefer an even grid so the "parallel" batch axis
        # splits evenly across the two TensorCores.
        tile = max(8, _round_up(pl.cdiv(n, grid_m + 1), 8))
        grid_m = pl.cdiv(n, tile)

    in_specs = [pl.BlockSpec((tile, d_in), lambda i: (i, 0))]
    for w in w_bf:
        # Full weight resident in VMEM; constant block index => fetched once.
        in_specs.append(pl.BlockSpec(w.shape, lambda i: (0, 0)))
    out_spec = pl.BlockSpec((tile, d_out), lambda i: (i, 0))

    flops = 2 * n * sum(w.shape[0] * w.shape[1] for w in weights)
    bytes_accessed = (n * d_in * x.dtype.itemsize        # input stream
                      + n * d_out * 4                     # f32 output stream
                      + sum(w.size * 2 for w in w_bf))    # bf16 weights (once)

    kernel = functools.partial(_mlp_kernel, n_layers)

    out = pl.pallas_call(
        kernel,
        out_shape=jax.ShapeDtypeStruct((n, d_out), jnp.float32),
        grid_spec=pltpu.PrefetchScalarGridSpec(
            num_scalar_prefetch=0,
            grid=(grid_m,),
            in_specs=in_specs,
            out_specs=out_spec,
        ),
        compiler_params=pltpu.CompilerParams(
            dimension_semantics=("parallel",),
            vmem_limit_bytes=vmem_limit_bytes,
        ),
        cost_estimate=pl.CostEstimate(
            flops=flops, transcendentals=0, bytes_accessed=bytes_accessed),
    )(x, *w_bf)
    return out


# ---------------------------------------------------------------------------
# Deterministic parameter init (kaiming_uniform_, nonlinearity='relu')
# bound = sqrt(2) * sqrt(3 / fan_in) = sqrt(6 / fan_in)
# ---------------------------------------------------------------------------
def init_mlp_weights(key, cfg):
    dims = (
        [cfg["n_input_dims"]]
        + [cfg["n_neurons"]] * cfg["n_hidden_layers"]
        + [cfg["n_output_dims"]]
    )
    weights = []
    for fan_in, fan_out in zip(dims[:-1], dims[1:]):
        key, sub = jax.random.split(key)
        bound = (6.0 / fan_in) ** 0.5
        # Stored as (in, out) — transposed PyTorch layout.
        w = jax.random.uniform(
            sub, (fan_in, fan_out), dtype=jnp.float32, minval=-bound, maxval=bound
        )
        weights.append(w)
    return weights


def mlp_reference(x, weights):
    h = x.astype(jnp.float32)
    for i, w in enumerate(weights):
        h = h @ w
        if i < len(weights) - 1:
            h = jnp.maximum(h, 0.0)
    return h


# ---------------------------------------------------------------------------
if __name__ == "__main__":
    # TODO(synk): loss_scale backward hook is backward-only; forward is unaffected.
    cfg = {
        "n_input_dims": 32,
        "n_neurons": 64,
        "n_hidden_layers": 2,
        "n_output_dims": 16,
    }
    key = jax.random.PRNGKey(0)
    k_x, k_w = jax.random.split(key)

    N = 256
    x = jax.random.normal(k_x, (N, cfg["n_input_dims"]), dtype=jnp.float32)
    weights = init_mlp_weights(k_w, cfg)

    out = jax.block_until_ready(mlp_forward(x, weights))

    ref = mlp_reference(x, weights)
    assert out.shape == (N, cfg["n_output_dims"])
    # bf16 operands / f32 accumulation => small relative error vs f32 reference.
    rel_err = float(jnp.max(jnp.abs(out - ref)) / (jnp.max(jnp.abs(ref)) + 1e-6))
    assert rel_err < 5e-2, f"relative error too large: {rel_err}"

    print("KERNEL_OK")
</pallas_src>

<mosaic_0001>
module attributes {stable_mosaic.version = 11 : i64} {
  func.func @_mlp_kernel(%arg0: i32, %arg1: memref<256x32xf32, #tpu.memory_space<vmem>>, %arg2: memref<32x64xbf16, #tpu.memory_space<vmem>>, %arg3: memref<64x64xbf16, #tpu.memory_space<vmem>>, %arg4: memref<64x16xbf16, #tpu.memory_space<vmem>>, %arg5: memref<256x16xf32, #tpu.memory_space<vmem>>) attributes {dimension_semantics = [#tpu.dimension_semantics<parallel>], iteration_bounds = array<i64: 1>, scalar_prefetch = 0 : i64, scratch_operands = 0 : i64, tpu.core_type = #tpu.core_type<tc>, window_params = [{transform_indices = @transform_0, window_bounds = array<i64: 256, 32>}, {pipeline_mode = #tpu.pipeline_mode<synchronous>, transform_indices = @transform_1, window_bounds = array<i64: 32, 64>}, {pipeline_mode = #tpu.pipeline_mode<synchronous>, transform_indices = @transform_2, window_bounds = array<i64: 64, 64>}, {pipeline_mode = #tpu.pipeline_mode<synchronous>, transform_indices = @transform_3, window_bounds = array<i64: 64, 16>}, {transform_indices = @transform_4, window_bounds = array<i64: 256, 16>}]} {
    %c0 = arith.constant 0 : index
    %c0_0 = arith.constant 0 : index
    %0 = vector.load %arg1[%c0, %c0_0] : memref<256x32xf32, #tpu.memory_space<vmem>>, vector<256x32xf32>
    %1 = arith.truncf %0 : vector<256x32xf32> to vector<256x32xbf16>
    %c0_1 = arith.constant 0 : index
    %c0_2 = arith.constant 0 : index
    %2 = vector.load %arg2[%c0_1, %c0_2] : memref<32x64xbf16, #tpu.memory_space<vmem>>, vector<32x64xbf16>
    %cst = arith.constant dense<0.000000e+00> : vector<256x64xf32>
    %3 = tpu.matmul %1, %2, %cst {dimension_numbers = #tpu.dot_dimension_numbers<[1], [0], [0], [1], [0, 0, 1, 1], [], []>} : vector<256x32xbf16>, vector<32x64xbf16>, vector<256x64xf32> -> vector<256x64xf32>
    %cst_3 = arith.constant 0.000000e+00 : f32
    %4 = vector.broadcast %cst_3 : f32 to vector<256x64xf32>
    %5 = arith.maximumf %3, %4 : vector<256x64xf32>
    %6 = arith.truncf %5 : vector<256x64xf32> to vector<256x64xbf16>
    %c0_4 = arith.constant 0 : index
    %c0_5 = arith.constant 0 : index
    %7 = vector.load %arg3[%c0_4, %c0_5] : memref<64x64xbf16, #tpu.memory_space<vmem>>, vector<64x64xbf16>
    %cst_6 = arith.constant dense<0.000000e+00> : vector<256x64xf32>
    %8 = tpu.matmul %6, %7, %cst_6 {dimension_numbers = #tpu.dot_dimension_numbers<[1], [0], [0], [1], [0, 0, 1, 1], [], []>} : vector<256x64xbf16>, vector<64x64xbf16>, vector<256x64xf32> -> vector<256x64xf32>
    %cst_7 = arith.constant 0.000000e+00 : f32
    %9 = vector.broadcast %cst_7 : f32 to vector<256x64xf32>
    %10 = arith.maximumf %8, %9 : vector<256x64xf32>
    %11 = arith.truncf %10 : vector<256x64xf32> to vector<256x64xbf16>
    %c0_8 = arith.constant 0 : index
    %c0_9 = arith.constant 0 : index
    %12 = vector.load %arg4[%c0_8, %c0_9] : memref<64x16xbf16, #tpu.memory_space<vmem>>, vector<64x16xbf16>
    %cst_10 = arith.constant dense<0.000000e+00> : vector<256x16xf32>
    %13 = tpu.matmul %11, %12, %cst_10 {dimension_numbers = #tpu.dot_dimension_numbers<[1], [0], [0], [1], [0, 0, 1, 1], [], []>} : vector<256x64xbf16>, vector<64x16xbf16>, vector<256x16xf32> -> vector<256x16xf32>
    %c0_11 = arith.constant 0 : index
    %c0_12 = arith.constant 0 : index
    %14 = vector.load %arg5[%c0_11, %c0_12] : memref<256x16xf32, #tpu.memory_space<vmem>>, vector<256x16xf32>
    tpu.vector_store %arg5[%c0_11, %c0_12], %13 {strides = array<i32>} : memref<256x16xf32, #tpu.memory_space<vmem>>, vector<256x16xf32>,
    return
  }
  func.func @transform_0(%arg0: i32) -> (i32, i32) {
    %c0_i32 = arith.constant 0 : i32
    %c0_i32_0 = arith.constant 0 : i32
    return %arg0, %c0_i32 : i32, i32
  }
  func.func @transform_1(%arg0: i32) -> (i32, i32) {
    %c0_i32 = arith.constant 0 : i32
    %c0_i32_0 = arith.constant 0 : i32
    %c0_i32_1 = arith.constant 0 : i32
    return %c0_i32, %c0_i32_0 : i32, i32
  }
  func.func @transform_2(%arg0: i32) -> (i32, i32) {
    %c0_i32 = arith.constant 0 : i32
    %c0_i32_0 = arith.constant 0 : i32
    %c0_i32_1 = arith.constant 0 : i32
    return %c0_i32, %c0_i32_0 : i32, i32
  }
  func.func @transform_3(%arg0: i32) -> (i32, i32) {
    %c0_i32 = arith.constant 0 : i32
    %c0_i32_0 = arith.constant 0 : i32
    %c0_i32_1 = arith.constant 0 : i32
    return %c0_i32, %c0_i32_0 : i32, i32
  }
  func.func @transform_4(%arg0: i32) -> (i32, i32) {
    %c0_i32 = arith.constant 0 : i32
    %c0_i32_0 = arith.constant 0 : i32
    return %arg0, %c0_i32 : i32, i32
  }
}

</mosaic_0001>

<llo_original>
// kernel: tpu_custom_call.1
$region0: #{tpu_custom_call.1}
  #allocation0 [shape = 'u32[]', space=smem, size = 0x4, offset = 0x4, fixed_abs, tag = 'smem constant byte address 0x4 - core index']
  #allocation1 [shape = 'u32[72,128]{1,0:T(1,128)}', space=vmem, size = 0x9000, scoped, tag = 'internal scratch']
  %s0 = inlined_call_operand.vmem [shape: f32[256,32], index: 0, kind: input, shape index: {}]
  %s1 = inlined_call_operand.vmem [shape: bf16[32,64], index: 1, kind: input, shape index: {}]
  %s2 = inlined_call_operand.vmem [shape: bf16[64,64], index: 2, kind: input, shape index: {}]
  %s3 = inlined_call_operand.vmem [shape: bf16[64,16], index: 3, kind: input, shape index: {}]
  %s4 = inlined_call_operand.vmem [shape: f32[256,16], index: 4, kind: output, shape index: {}]
  %s5 = sld [smem:[#allocation0]]
  $region26: #{tpu_custom_call.1} parent=0
    _
  %s7 = ssub.s32 1, %s5
  %s8 = scalar_select 0, %s7, %s5
  // Predicated region
  $region2: #{tpu_custom_call.1} parent=0 // pred_check
    _
  $region3: #{tpu_custom_call.1} parent=0 // pred_check_branch
    %10 = sbr.rel (0) target = $region5
  $region4: #{tpu_custom_call.1} parent=0 // pred_region
    _
  $region5: #{tpu_custom_call.1} parent=0 // pred_fallthru
    _
  // Predicated region
  $region6: #{tpu_custom_call.1} parent=0 // pred_check
    _
  $region7: #{tpu_custom_call.1} parent=0 // pred_check_branch
    %12 = sbr.rel (0) target = $region9
  $region8: #{tpu_custom_call.1} parent=0 // pred_region
    _
  $region9: #{tpu_custom_call.1} parent=0 // pred_fallthru
    _
  // Predicated region
  $region10: #{tpu_custom_call.1} parent=0 // pred_check
    _
  $region11: #{tpu_custom_call.1} parent=0 // pred_check_branch
    %14 = sbr.rel (0) target = $region13
  $region12: #{tpu_custom_call.1} parent=0 // pred_region
    _
  $region13: #{tpu_custom_call.1} parent=0 // pred_fallthru
    _
  // Predicated region
  $region14: #{tpu_custom_call.1} parent=0 // pred_check
    _
  $region15: #{tpu_custom_call.1} parent=0 // pred_check_branch
    %16 = sbr.rel (0) target = $region17
  $region16: #{tpu_custom_call.1} parent=0 // pred_region
    _
  $region17: #{tpu_custom_call.1} parent=0 // pred_fallthru
    _
  %v18 = vld [vmem:[%s0] sm:$0xff]
  %v19 = vld [vmem:[%s0 + $0x8] sm:$0xff]
  %v20 = vld [vmem:[%s0 + $0x10] sm:$0xff]
  %v21 = vld [vmem:[%s0 + $0x18] sm:$0xff]
  %v22 = vld [vmem:[%s0 + $0x20] sm:$0xff]
  %v23 = vld [vmem:[%s0 + $0x28] sm:$0xff]
  %v24 = vld [vmem:[%s0 + $0x30] sm:$0xff]
  %v25 = vld [vmem:[%s0 + $0x38] sm:$0xff]
  %v26 = vld [vmem:[%s0 + $0x40] sm:$0xff]
  %v27 = vld [vmem:[%s0 + $0x48] sm:$0xff]
  %v28 = vld [vmem:[%s0 + $0x50] sm:$0xff]
  %v29 = vld [vmem:[%s0 + $0x58] sm:$0xff]
  %v30 = vld [vmem:[%s0 + $0x60] sm:$0xff]
  %v31 = vld [vmem:[%s0 + $0x68] sm:$0xff]
  %v32 = vld [vmem:[%s0 + $0x70] sm:$0xff]
  %v33 = vld [vmem:[%s0 + $0x78] sm:$0xff]
  %v34 = vld [vmem:[%s0 + $0x80] sm:$0xff]
  %v35 = vld [vmem:[%s0 + $0x88] sm:$0xff]
  %v36 = vld [vmem:[%s0 + $0x90] sm:$0xff]
  %v37 = vld [vmem:[%s0 + $0x98] sm:$0xff]
  %v38 = vld [vmem:[%s0 + $0xa0] sm:$0xff]
  %v39 = vld [vmem:[%s0 + $0xa8] sm:$0xff]
  %v40 = vld [vmem:[%s0 + $0xb0] sm:$0xff]
  %v41 = vld [vmem:[%s0 + $0xb8] sm:$0xff]
  %v42 = vld [vmem:[%s0 + $0xc0] sm:$0xff]
  %v43 = vld [vmem:[%s0 + $0xc8] sm:$0xff]
  %v44 = vld [vmem:[%s0 + $0xd0] sm:$0xff]
  %v45 = vld [vmem:[%s0 + $0xd8] sm:$0xff]
  %v46 = vld [vmem:[%s0 + $0xe0] sm:$0xff]
  %v47 = vld [vmem:[%s0 + $0xe8] sm:$0xff]
  %v48 = vld [vmem:[%s0 + $0xf0] sm:$0xff]
  %v49 = vld [vmem:[%s0 + $0xf8] sm:$0xff]
  %v50 = vpack.c.bf16 %v19, %v18
  %v51 = vpack.c.bf16 %v21, %v20
  %v52 = vpack.c.bf16 %v23, %v22
  %v53 = vpack.c.bf16 %v25, %v24
  %v54 = vpack.c.bf16 %v27, %v26
  %v55 = vpack.c.bf16 %v29, %v28
  %v56 = vpack.c.bf16 %v31, %v30
  %v57 = vpack.c.bf16 %v33, %v32
  %v58 = vpack.c.bf16 %v35, %v34
  %v59 = vpack.c.bf16 %v37, %v36
  %v60 = vpack.c.bf16 %v39, %v38
  %v61 = vpack.c.bf16 %v41, %v40
  %v62 = vpack.c.bf16 %v43, %v42
  %v63 = vpack.c.bf16 %v45, %v44
  %v64 = vpack.c.bf16 %v47, %v46
  %v65 = vpack.c.bf16 %v49, %v48
  %v66 = vld [vmem:[%s1] sm:$0xf]
  %v67 = vld [vmem:[%s1 + $0x4] sm:$0xf]
  %v68 = vld [vmem:[%s1 + $0x8] sm:$0xf]
  %v69 = vld [vmem:[%s1 + $0xc] sm:$0xf]
  %v74 = vunpack.c.l.b16 %v66
  %v75 = vunpack.c.l.b16 %v67
  %v76 = vunpack.c.l.b16 %v68
  %v77 = vunpack.c.l.b16 %v69
  %v78 = vpack.c.b16 %v75, %v74
  %v79 = vpack.c.b16 %v77, %v76
  %vm82 = vcmask 261120
  %v84 = vsel %vm82, %v50, 0
  %v87 = vsel %vm82, %v51, 0
  %v90 = vsel %vm82, %v52, 0
  %v93 = vsel %vm82, %v53, 0
  %v96 = vsel %vm82, %v54, 0
  %v99 = vsel %vm82, %v55, 0
  %v102 = vsel %vm82, %v56, 0
  %v105 = vsel %vm82, %v57, 0
  %v108 = vsel %vm82, %v58, 0
  %v111 = vsel %vm82, %v59, 0
  %v114 = vsel %vm82, %v60, 0
  %v117 = vsel %vm82, %v61, 0
  %v120 = vsel %vm82, %v62, 0
  %v123 = vsel %vm82, %v63, 0
  %v126 = vsel %vm82, %v64, 0
  %v129 = vsel %vm82, %v65, 0
  %131 = vmatpush.bf16.msra.mxu0 0
  %132 = vmatpush.bf16.msra.mxu0 0
  %133 = vmatpush.bf16.msra.mxu0 0
  %134 = vmatpush.bf16.msra.mxu0 0
  %135 = vmatpush.bf16.msra.mxu0 0
  %136 = vmatpush.bf16.msra.mxu0 0
  %137 = vmatpush.bf16.msra.mxu0 %v79
  %138 = vmatpush.bf16.msra.mxu0 %v78
  %139 = vmatmul.bf16.gmra.mxu0 %v84
  %v140 = vpop.f32.mrf.mxu0
  %v141 = vadd.f32 0.0, %v140
  %v142 = vpop.f32.mrf.mxu0
  %v143 = vadd.f32 0.0, %v142
  %144 = vmatmul.bf16.gmra.mxu0 %v87
  %v145 = vpop.f32.mrf.mxu0
  %v146 = vadd.f32 0.0, %v145
  %v147 = vpop.f32.mrf.mxu0
  %v148 = vadd.f32 0.0, %v147
  %149 = vmatmul.bf16.gmra.mxu0 %v90
  %v150 = vpop.f32.mrf.mxu0
  %v151 = vadd.f32 0.0, %v150
  %v152 = vpop.f32.mrf.mxu0
  %v153 = vadd.f32 0.0, %v152
  %154 = vmatmul.bf16.gmra.mxu0 %v93
  %v155 = vpop.f32.mrf.mxu0
  %v156 = vadd.f32 0.0, %v155
  %v157 = vpop.f32.mrf.mxu0
  %v158 = vadd.f32 0.0, %v157
  %159 = vmatmul.bf16.gmra.mxu0 %v96
  %v160 = vpop.f32.mrf.mxu0
  %v161 = vadd.f32 0.0, %v160
  %v162 = vpop.f32.mrf.mxu0
  %v163 = vadd.f32 0.0, %v162
  %164 = vmatmul.bf16.gmra.mxu0 %v99
  %v165 = vpop.f32.mrf.mxu0
  %v166 = vadd.f32 0.0, %v165
  %v167 = vpop.f32.mrf.mxu0
  %v168 = vadd.f32 0.0, %v167
  %169 = vmatmul.bf16.gmra.mxu0 %v102
  %v170 = vpop.f32.mrf.mxu0
  %v171 = vadd.f32 0.0, %v170
  %v172 = vpop.f32.mrf.mxu0
  %v173 = vadd.f32 0.0, %v172
  %174 = vmatmul.bf16.gmra.mxu0 %v105
  %v175 = vpop.f32.mrf.mxu0
  %v176 = vadd.f32 0.0, %v175
  %v177 = vpop.f32.mrf.mxu0
  %v178 = vadd.f32 0.0, %v177
  %179 = vmatmul.bf16.gmra.mxu0 %v108
  %v180 = vpop.f32.mrf.mxu0
  %v181 = vadd.f32 0.0, %v180
  %v182 = vpop.f32.mrf.mxu0
  %v183 = vadd.f32 0.0, %v182
  %184 = vmatmul.bf16.gmra.mxu0 %v111
  %v185 = vpop.f32.mrf.mxu0
  %v186 = vadd.f32 0.0, %v185
  %v187 = vpop.f32.mrf.mxu0
  %v188 = vadd.f32 0.0, %v187
  %189 = vmatmul.bf16.gmra.mxu0 %v114
  %v190 = vpop.f32.mrf.mxu0
  %v191 = vadd.f32 0.0, %v190
  %v192 = vpop.f32.mrf.mxu0
  %v193 = vadd.f32 0.0, %v192
  %194 = vmatmul.bf16.gmra.mxu0 %v117
  %v195 = vpop.f32.mrf.mxu0
  %v196 = vadd.f32 0.0, %v195
  %v197 = vpop.f32.mrf.mxu0
  %v198 = vadd.f32 0.0, %v197
  %199 = vmatmul.bf16.gmra.mxu0 %v120
  %v200 = vpop.f32.mrf.mxu0
  %v201 = vadd.f32 0.0, %v200
  %v202 = vpop.f32.mrf.mxu0
  %v203 = vadd.f32 0.0, %v202
  %204 = vmatmul.bf16.gmra.mxu0 %v123
  %v205 = vpop.f32.mrf.mxu0
  %v206 = vadd.f32 0.0, %v205
  %v207 = vpop.f32.mrf.mxu0
  %v208 = vadd.f32 0.0, %v207
  %209 = vmatmul.bf16.gmra.mxu0 %v126
  %v210 = vpop.f32.mrf.mxu0
  %v211 = vadd.f32 0.0, %v210
  %v212 = vpop.f32.mrf.mxu0
  %v213 = vadd.f32 0.0, %v212
  %214 = vmatmul.bf16.gmra.mxu0 %v129
  %v215 = vpop.f32.mrf.mxu0
  %v216 = vadd.f32 0.0, %v215
  %v217 = vpop.f32.mrf.mxu0
  %v218 = vadd.f32 0.0, %v217
  %219 = vdwg.mxu0
  %v220 = vmax.f32 %v141, 0.0
  %v221 = vmax.f32 %v143, 0.0
  %v222 = vmax.f32 %v146, 0.0
  %v223 = vmax.f32 %v148, 0.0
  %v224 = vmax.f32 %v151, 0.0
  %v225 = vmax.f32 %v153, 0.0
  %v226 = vmax.f32 %v156, 0.0
  %v227 = vmax.f32 %v158, 0.0
  %v228 = vmax.f32 %v161, 0.0
  %v229 = vmax.f32 %v163, 0.0
  %v230 = vmax.f32 %v166, 0.0
  %v231 = vmax.f32 %v168, 0.0
  %v232 = vmax.f32 %v171, 0.0
  %v233 = vmax.f32 %v173, 0.0
  %v234 = vmax.f32 %v176, 0.0
  %v235 = vmax.f32 %v178, 0.0
  %v236 = vmax.f32 %v181, 0.0
  %v237 = vmax.f32 %v183, 0.0
  %v238 = vmax.f32 %v186, 0.0
  %v239 = vmax.f32 %v188, 0.0
  %v240 = vmax.f32 %v191, 0.0
  %v241 = vmax.f32 %v193, 0.0
  %v242 = vmax.f32 %v196, 0.0
  %v243 = vmax.f32 %v198, 0.0
  %v244 = vmax.f32 %v201, 0.0
  %v245 = vmax.f32 %v203, 0.0
  %v246 = vmax.f32 %v206, 0.0
  %v247 = vmax.f32 %v208, 0.0
  %v248 = vmax.f32 %v211, 0.0
  %v249 = vmax.f32 %v213, 0.0
  %v250 = vmax.f32 %v216, 0.0
  %v251 = vmax.f32 %v218, 0.0
  %v252 = vpack.c.bf16 %v221, %v220
  %v253 = vpack.c.bf16 %v223, %v222
  %v254 = vpack.c.bf16 %v225, %v224
  %v255 = vpack.c.bf16 %v227, %v226
  %v256 = vpack.c.bf16 %v229, %v228
  %v257 = vpack.c.bf16 %v231, %v230
  %v258 = vpack.c.bf16 %v233, %v232
  %v259 = vpack.c.bf16 %v235, %v234
  %v260 = vpack.c.bf16 %v237, %v236
  %v261 = vpack.c.bf16 %v239, %v238
  %v262 = vpack.c.bf16 %v241, %v240
  %v263 = vpack.c.bf16 %v243, %v242
  %v264 = vpack.c.bf16 %v245, %v244
  %v265 = vpack.c.bf16 %v247, %v246
  %v266 = vpack.c.bf16 %v249, %v248
  %v267 = vpack.c.bf16 %v251, %v250
  %v268 = vld [vmem:[%s2] sm:$0xf]
  %v269 = vld [vmem:[%s2 + $0x4] sm:$0xf]
  %v270 = vld [vmem:[%s2 + $0x8] sm:$0xf]
  %v271 = vld [vmem:[%s2 + $0xc] sm:$0xf]
  %v272 = vld [vmem:[%s2 + $0x10] sm:$0xf]
  %v273 = vld [vmem:[%s2 + $0x14] sm:$0xf]
  %v274 = vld [vmem:[%s2 + $0x18] sm:$0xf]
  %v275 = vld [vmem:[%s2 + $0x1c] sm:$0xf]
  %v284 = vunpack.c.l.b16 %v268
  %v285 = vunpack.c.l.b16 %v269
  %v286 = vunpack.c.l.b16 %v270
  %v287 = vunpack.c.l.b16 %v271
  %v288 = vunpack.c.l.b16 %v272
  %v289 = vunpack.c.l.b16 %v273
  %v290 = vunpack.c.l.b16 %v274
  %v291 = vunpack.c.l.b16 %v275
  %v292 = vpack.c.b16 %v285, %v284
  %v293 = vpack.c.b16 %v287, %v286
  %v294 = vpack.c.b16 %v289, %v288
  %v295 = vpack.c.b16 %v291, %v290
  %vm300 = vcmask 523264
  %v302 = vsel %vm300, %v252, 0
  %v305 = vsel %vm300, %v253, 0
  %v308 = vsel %vm300, %v254, 0
  %v311 = vsel %vm300, %v255, 0
  %v314 = vsel %vm300, %v256, 0
  %v317 = vsel %vm300, %v257, 0
  %v320 = vsel %vm300, %v258, 0
  %v323 = vsel %vm300, %v259, 0
  %v326 = vsel %vm300, %v260, 0
  %v329 = vsel %vm300, %v261, 0
  %v332 = vsel %vm300, %v262, 0
  %v335 = vsel %vm300, %v263, 0
  %v338 = vsel %vm300, %v264, 0
  %v341 = vsel %vm300, %v265, 0
  %v344 = vsel %vm300, %v266, 0
  %v347 = vsel %vm300, %v267, 0
  %349 = vmatpush.bf16.msra.mxu0 0
  %350 = vmatpush.bf16.msra.mxu0 0
  %351 = vmatpush.bf16.msra.mxu0 0
  %352 = vmatpush.bf16.msra.mxu0 0
  %353 = vmatpush.bf16.msra.mxu0 %v295
  %354 = vmatpush.bf16.msra.mxu0 %v294
  %355 = vmatpush.bf16.msra.mxu0 %v293
  %356 = vmatpush.bf16.msra.mxu0 %v292
  %357 = vmatmul.bf16.gmra.mxu0 %v302
  %v358 = vpop.f32.mrf.mxu0
  %v359 = vadd.f32 0.0, %v358
  %v360 = vpop.f32.mrf.mxu0
  %v361 = vadd.f32 0.0, %v360
  %362 = vmatmul.bf16.gmra.mxu0 %v305
  %v363 = vpop.f32.mrf.mxu0
  %v364 = vadd.f32 0.0, %v363
  %v365 = vpop.f32.mrf.mxu0
  %v366 = vadd.f32 0.0, %v365
  %367 = vmatmul.bf16.gmra.mxu0 %v308
  %v368 = vpop.f32.mrf.mxu0
  %v369 = vadd.f32 0.0, %v368
  %v370 = vpop.f32.mrf.mxu0
  %v371 = vadd.f32 0.0, %v370
  %372 = vmatmul.bf16.gmra.mxu0 %v311
  %v373 = vpop.f32.mrf.mxu0
  %v374 = vadd.f32 0.0, %v373
  %v375 = vpop.f32.mrf.mxu0
  %v376 = vadd.f32 0.0, %v375
  %377 = vmatmul.bf16.gmra.mxu0 %v314
  %v378 = vpop.f32.mrf.mxu0
  %v379 = vadd.f32 0.0, %v378
  %v380 = vpop.f32.mrf.mxu0
  %v381 = vadd.f32 0.0, %v380
  %382 = vmatmul.bf16.gmra.mxu0 %v317
  %v383 = vpop.f32.mrf.mxu0
  %v384 = vadd.f32 0.0, %v383
  %v385 = vpop.f32.mrf.mxu0
  %v386 = vadd.f32 0.0, %v385
  %387 = vmatmul.bf16.gmra.mxu0 %v320
  %v388 = vpop.f32.mrf.mxu0
  %v389 = vadd.f32 0.0, %v388
  %v390 = vpop.f32.mrf.mxu0
  %v391 = vadd.f32 0.0, %v390
  %392 = vmatmul.bf16.gmra.mxu0 %v323
  %v393 = vpop.f32.mrf.mxu0
  %v394 = vadd.f32 0.0, %v393
  %v395 = vpop.f32.mrf.mxu0
  %v396 = vadd.f32 0.0, %v395
  %397 = vmatmul.bf16.gmra.mxu0 %v326
  %v398 = vpop.f32.mrf.mxu0
  %v399 = vadd.f32 0.0, %v398
  %v400 = vpop.f32.mrf.mxu0
  %v401 = vadd.f32 0.0, %v400
  %402 = vmatmul.bf16.gmra.mxu0 %v329
  %v403 = vpop.f32.mrf.mxu0
  %v404 = vadd.f32 0.0, %v403
  %v405 = vpop.f32.mrf.mxu0
  %v406 = vadd.f32 0.0, %v405
  %407 = vmatmul.bf16.gmra.mxu0 %v332
  %v408 = vpop.f32.mrf.mxu0
  %v409 = vadd.f32 0.0, %v408
  %v410 = vpop.f32.mrf.mxu0
  %v411 = vadd.f32 0.0, %v410
  %412 = vmatmul.bf16.gmra.mxu0 %v335
  %v413 = vpop.f32.mrf.mxu0
  %v414 = vadd.f32 0.0, %v413
  %v415 = vpop.f32.mrf.mxu0
  %v416 = vadd.f32 0.0, %v415
  %417 = vmatmul.bf16.gmra.mxu0 %v338
  %v418 = vpop.f32.mrf.mxu0
  %v419 = vadd.f32 0.0, %v418
  %v420 = vpop.f32.mrf.mxu0
  %v421 = vadd.f32 0.0, %v420
  %422 = vmatmul.bf16.gmra.mxu0 %v341
  %v423 = vpop.f32.mrf.mxu0
  %v424 = vadd.f32 0.0, %v423
  %v425 = vpop.f32.mrf.mxu0
  %v426 = vadd.f32 0.0, %v425
  %427 = vmatmul.bf16.gmra.mxu0 %v344
  %v428 = vpop.f32.mrf.mxu0
  %v429 = vadd.f32 0.0, %v428
  %v430 = vpop.f32.mrf.mxu0
  %v431 = vadd.f32 0.0, %v430
  %432 = vmatmul.bf16.gmra.mxu0 %v347
  %v433 = vpop.f32.mrf.mxu0
  %v434 = vadd.f32 0.0, %v433
  %v435 = vpop.f32.mrf.mxu0
  %v436 = vadd.f32 0.0, %v435
  %437 = vdwg.mxu0
  %v438 = vmax.f32 %v359, 0.0
  %v439 = vmax.f32 %v361, 0.0
  %v440 = vmax.f32 %v364, 0.0
  %v441 = vmax.f32 %v366, 0.0
  %v442 = vmax.f32 %v369, 0.0
  %v443 = vmax.f32 %v371, 0.0
  %v444 = vmax.f32 %v374, 0.0
  %v445 = vmax.f32 %v376, 0.0
  %v446 = vmax.f32 %v379, 0.0
  %v447 = vmax.f32 %v381, 0.0
  %v448 = vmax.f32 %v384, 0.0
  %v449 = vmax.f32 %v386, 0.0
  %v450 = vmax.f32 %v389, 0.0
  %v451 = vmax.f32 %v391, 0.0
  %v452 = vmax.f32 %v394, 0.0
  %v453 = vmax.f32 %v396, 0.0
  %v454 = vmax.f32 %v399, 0.0
  %v455 = vmax.f32 %v401, 0.0
  %v456 = vmax.f32 %v404, 0.0
  %v457 = vmax.f32 %v406, 0.0
  %v458 = vmax.f32 %v409, 0.0
  %v459 = vmax.f32 %v411, 0.0
  %v460 = vmax.f32 %v414, 0.0
  %v461 = vmax.f32 %v416, 0.0
  %v462 = vmax.f32 %v419, 0.0
  %v463 = vmax.f32 %v421, 0.0
  %v464 = vmax.f32 %v424, 0.0
  %v465 = vmax.f32 %v426, 0.0
  %v466 = vmax.f32 %v429, 0.0
  %v467 = vmax.f32 %v431, 0.0
  %v468 = vmax.f32 %v434, 0.0
  %v469 = vmax.f32 %v436, 0.0
  %v470 = vpack.c.bf16 %v439, %v438
  %v471 = vpack.c.bf16 %v441, %v440
  %v472 = vpack.c.bf16 %v443, %v442
  %v473 = vpack.c.bf16 %v445, %v444
  %v474 = vpack.c.bf16 %v447, %v446
  %v475 = vpack.c.bf16 %v449, %v448
  %v476 = vpack.c.bf16 %v451, %v450
  %v477 = vpack.c.bf16 %v453, %v452
  %v478 = vpack.c.bf16 %v455, %v454
  %v479 = vpack.c.bf16 %v457, %v456
  %v480 = vpack.c.bf16 %v459, %v458
  %v481 = vpack.c.bf16 %v461, %v460
  %v482 = vpack.c.bf16 %v463, %v462
  %v483 = vpack.c.bf16 %v465, %v464
  %v484 = vpack.c.bf16 %v467, %v466
  %v485 = vpack.c.bf16 %v469, %v468
  %v486 = vld [vmem:[%s3] sm:$0xf]
  %v487 = vld [vmem:[%s3 + $0x4] sm:$0xf]
  %v488 = vld [vmem:[%s3 + $0x8] sm:$0xf]
  %v489 = vld [vmem:[%s3 + $0xc] sm:$0xf]
  %v490 = vld [vmem:[%s3 + $0x10] sm:$0xf]
  %v491 = vld [vmem:[%s3 + $0x14] sm:$0xf]
  %v492 = vld [vmem:[%s3 + $0x18] sm:$0xf]
  %v493 = vld [vmem:[%s3 + $0x1c] sm:$0xf]
  %v502 = vunpack.c.l.b16 %v486
  %v503 = vunpack.c.l.b16 %v487
  %v504 = vunpack.c.l.b16 %v488
  %v505 = vunpack.c.l.b16 %v489
  %v506 = vunpack.c.l.b16 %v490
  %v507 = vunpack.c.l.b16 %v491
  %v508 = vunpack.c.l.b16 %v492
  %v509 = vunpack.c.l.b16 %v493
  %v510 = vpack.c.b16 %v503, %v502
  %v511 = vpack.c.b16 %v505, %v504
  %v512 = vpack.c.b16 %v507, %v506
  %v513 = vpack.c.b16 %v509, %v508
  %v519 = vsel %vm300, %v470, 0
  %v522 = vsel %vm300, %v471, 0
  %v525 = vsel %vm300, %v472, 0
  %v528 = vsel %vm300, %v473, 0
  %v531 = vsel %vm300, %v474, 0
  %v534 = vsel %vm300, %v475, 0
  %v537 = vsel %vm300, %v476, 0
  %v540 = vsel %vm300, %v477, 0
  %v543 = vsel %vm300, %v478, 0
  %v546 = vsel %vm300, %v479, 0
  %v549 = vsel %vm300, %v480, 0
  %v552 = vsel %vm300, %v481, 0
  %v555 = vsel %vm300, %v482, 0
  %v558 = vsel %vm300, %v483, 0
  %v561 = vsel %vm300, %v484, 0
  %v564 = vsel %vm300, %v485, 0
  %566 = vmatpush.bf16.msra.mxu0 0
  %567 = vmatpush.bf16.msra.mxu0 0
  %568 = vmatpush.bf16.msra.mxu0 0
  %569 = vmatpush.bf16.msra.mxu0 0
  %570 = vmatpush.bf16.msra.mxu0 %v513
  %571 = vmatpush.bf16.msra.mxu0 %v512
  %572 = vmatpush.bf16.msra.mxu0 %v511
  %573 = vmatpush.bf16.msra.mxu0 %v510
  %574 = vmatmul.bf16.gmra.mxu0 %v519
  %v575 = vpop.f32.mrf.mxu0
  %v576 = vadd.f32 0.0, %v575
  %v577 = vpop.f32.mrf.mxu0
  %v578 = vadd.f32 0.0, %v577
  %579 = vmatmul.bf16.gmra.mxu0 %v522
  %v580 = vpop.f32.mrf.mxu0
  %v581 = vadd.f32 0.0, %v580
  %v582 = vpop.f32.mrf.mxu0
  %v583 = vadd.f32 0.0, %v582
  %584 = vmatmul.bf16.gmra.mxu0 %v525
  %v585 = vpop.f32.mrf.mxu0
  %v586 = vadd.f32 0.0, %v585
  %v587 = vpop.f32.mrf.mxu0
  %v588 = vadd.f32 0.0, %v587
  %589 = vmatmul.bf16.gmra.mxu0 %v528
  %v590 = vpop.f32.mrf.mxu0
  %v591 = vadd.f32 0.0, %v590
  %v592 = vpop.f32.mrf.mxu0
  %v593 = vadd.f32 0.0, %v592
  %594 = vmatmul.bf16.gmra.mxu0 %v531
  %v595 = vpop.f32.mrf.mxu0
  %v596 = vadd.f32 0.0, %v595
  %v597 = vpop.f32.mrf.mxu0
  %v598 = vadd.f32 0.0, %v597
  %599 = vmatmul.bf16.gmra.mxu0 %v534
  %v600 = vpop.f32.mrf.mxu0
  %v601 = vadd.f32 0.0, %v600
  %v602 = vpop.f32.mrf.mxu0
  %v603 = vadd.f32 0.0, %v602
  %604 = vmatmul.bf16.gmra.mxu0 %v537
  %v605 = vpop.f32.mrf.mxu0
  %v606 = vadd.f32 0.0, %v605
  %v607 = vpop.f32.mrf.mxu0
  %v608 = vadd.f32 0.0, %v607
  %609 = vmatmul.bf16.gmra.mxu0 %v540
  %v610 = vpop.f32.mrf.mxu0
  %v611 = vadd.f32 0.0, %v610
  %v612 = vpop.f32.mrf.mxu0
  %v613 = vadd.f32 0.0, %v612
  %614 = vmatmul.bf16.gmra.mxu0 %v543
  %v615 = vpop.f32.mrf.mxu0
  %v616 = vadd.f32 0.0, %v615
  %v617 = vpop.f32.mrf.mxu0
  %v618 = vadd.f32 0.0, %v617
  %619 = vmatmul.bf16.gmra.mxu0 %v546
  %v620 = vpop.f32.mrf.mxu0
  %v621 = vadd.f32 0.0, %v620
  %v622 = vpop.f32.mrf.mxu0
  %v623 = vadd.f32 0.0, %v622
  %624 = vmatmul.bf16.gmra.mxu0 %v549
  %v625 = vpop.f32.mrf.mxu0
  %v626 = vadd.f32 0.0, %v625
  %v627 = vpop.f32.mrf.mxu0
  %v628 = vadd.f32 0.0, %v627
  %629 = vmatmul.bf16.gmra.mxu0 %v552
  %v630 = vpop.f32.mrf.mxu0
  %v631 = vadd.f32 0.0, %v630
  %v632 = vpop.f32.mrf.mxu0
  %v633 = vadd.f32 0.0, %v632
  %634 = vmatmul.bf16.gmra.mxu0 %v555
  %v635 = vpop.f32.mrf.mxu0
  %v636 = vadd.f32 0.0, %v635
  %v637 = vpop.f32.mrf.mxu0
  %v638 = vadd.f32 0.0, %v637
  %639 = vmatmul.bf16.gmra.mxu0 %v558
  %v640 = vpop.f32.mrf.mxu0
  %v641 = vadd.f32 0.0, %v640
  %v642 = vpop.f32.mrf.mxu0
  %v643 = vadd.f32 0.0, %v642
  %644 = vmatmul.bf16.gmra.mxu0 %v561
  %v645 = vpop.f32.mrf.mxu0
  %v646 = vadd.f32 0.0, %v645
  %v647 = vpop.f32.mrf.mxu0
  %v648 = vadd.f32 0.0, %v647
  %649 = vmatmul.bf16.gmra.mxu0 %v564
  %v650 = vpop.f32.mrf.mxu0
  %v651 = vadd.f32 0.0, %v650
  %v652 = vpop.f32.mrf.mxu0
  %v653 = vadd.f32 0.0, %v652
  %654 = vdwg.mxu0
  %vm655 = vcmask 130048
  %656 = vst.msk [vmem:[%s4] sm:$0xff] %vm655, %v576
  %657 = vst.msk [vmem:[%s4 + $0x8] sm:$0xff] %vm655, %v578
  %658 = vst.msk [vmem:[%s4 + $0x10] sm:$0xff] %vm655, %v581
  %659 = vst.msk [vmem:[%s4 + $0x18] sm:$0xff] %vm655, %v583
  %660 = vst.msk [vmem:[%s4 + $0x20] sm:$0xff] %vm655, %v586
  %661 = vst.msk [vmem:[%s4 + $0x28] sm:$0xff] %vm655, %v588
  %662 = vst.msk [vmem:[%s4 + $0x30] sm:$0xff] %vm655, %v591
  %663 = vst.msk [vmem:[%s4 + $0x38] sm:$0xff] %vm655, %v593
  %664 = vst.msk [vmem:[%s4 + $0x40] sm:$0xff] %vm655, %v596
  %665 = vst.msk [vmem:[%s4 + $0x48] sm:$0xff] %vm655, %v598
  %666 = vst.msk [vmem:[%s4 + $0x50] sm:$0xff] %vm655, %v601
  %667 = vst.msk [vmem:[%s4 + $0x58] sm:$0xff] %vm655, %v603
  %668 = vst.msk [vmem:[%s4 + $0x60] sm:$0xff] %vm655, %v606
  %669 = vst.msk [vmem:[%s4 + $0x68] sm:$0xff] %vm655, %v608
  %670 = vst.msk [vmem:[%s4 + $0x70] sm:$0xff] %vm655, %v611
  %671 = vst.msk [vmem:[%s4 + $0x78] sm:$0xff] %vm655, %v613
  %672 = vst.msk [vmem:[%s4 + $0x80] sm:$0xff] %vm655, %v616
  %673 = vst.msk [vmem:[%s4 + $0x88] sm:$0xff] %vm655, %v618
  %674 = vst.msk [vmem:[%s4 + $0x90] sm:$0xff] %vm655, %v621
  %675 = vst.msk [vmem:[%s4 + $0x98] sm:$0xff] %vm655, %v623
  %676 = vst.msk [vmem:[%s4 + $0xa0] sm:$0xff] %vm655, %v626
  %677 = vst.msk [vmem:[%s4 + $0xa8] sm:$0xff] %vm655, %v628
  %678 = vst.msk [vmem:[%s4 + $0xb0] sm:$0xff] %vm655, %v631
  %679 = vst.msk [vmem:[%s4 + $0xb8] sm:$0xff] %vm655, %v633
  %680 = vst.msk [vmem:[%s4 + $0xc0] sm:$0xff] %vm655, %v636
  %681 = vst.msk [vmem:[%s4 + $0xc8] sm:$0xff] %vm655, %v638
  %682 = vst.msk [vmem:[%s4 + $0xd0] sm:$0xff] %vm655, %v641
  %683 = vst.msk [vmem:[%s4 + $0xd8] sm:$0xff] %vm655, %v643
  %684 = vst.msk [vmem:[%s4 + $0xe0] sm:$0xff] %vm655, %v646
  %685 = vst.msk [vmem:[%s4 + $0xe8] sm:$0xff] %vm655, %v648
  %686 = vst.msk [vmem:[%s4 + $0xf0] sm:$0xff] %vm655, %v651
  %687 = vst.msk [vmem:[%s4 + $0xf8] sm:$0xff] %vm655, %v653
  // Predicated region
  $region18: #{tpu_custom_call.1} parent=0 // pred_check
    _
  $region19: #{tpu_custom_call.1} parent=0 // pred_check_branch
    %689 = sbr.rel (0) target = $region21
  $region20: #{tpu_custom_call.1} parent=0 // pred_region
    _
  $region21: #{tpu_custom_call.1} parent=0 // pred_fallthru
    _
  // Predicated region
  $region22: #{tpu_custom_call.1} parent=0 // pred_check
    _
  $region23: #{tpu_custom_call.1} parent=0 // pred_check_branch
    %691 = sbr.rel (0) target = $region25
  $region24: #{tpu_custom_call.1} parent=0 // pred_region
    _
  $region25: #{tpu_custom_call.1} parent=0 // pred_fallthru
    _

</llo_original>
